<compile_context>
chip_gen: v5e
topology: v5e:2x2
jax: 0.10.0
libtpu: 0.0.40
codegen_flags: <defaults>
</compile_context>

<pallas_src>
import functools
import math

import jax
import jax.numpy as jnp
import numpy as np
from jax.experimental import pallas as pl
from jax.experimental.pallas import tpu as pltpu


def _round_up(x, m):
    return (x + m - 1) // m * m


def _decoder_kernel(x_ref, w_ref, b_ref, lbl_ref, out_ref, *, num_labels,
                    inv_max_ent):
    """Packed lane-dense output:
         lanes [0:L)  -> logits
         lane  L      -> normalized entropy
         lane  L+1    -> per-sample NLL
         lanes > L+1  -> 0
    """
    L = num_labels
    x = x_ref[...]                                   # (tb, H), native dtype
    w = w_ref[...]                                   # (H, Wp), pre-transposed, padded
    # Canonical [M,K]x[K,N] MXU matmul, f32 accumulation.
    logits = jnp.dot(x, w, preferred_element_type=jnp.float32)
    logits = logits + b_ref[...]                     # (tb, Wp) f32 (padded lanes == 0)

    tb, Wp = logits.shape
    lane = jax.lax.broadcasted_iota(jnp.int32, (tb, Wp), 1)
    valid = lane < L

    # ---- softmax statistics over the valid lanes only (NaN-safe) ----
    z = jnp.where(valid, logits, jnp.float32(-1e30))  # masked logits
    m = jnp.max(z, axis=1, keepdims=True)             # (tb, 1)
    e = jnp.exp(z - m)                                 # exactly 0 on padded lanes
    s = jnp.sum(e, axis=1, keepdims=True)              # (tb, 1)
    inv_s = pl.reciprocal(s, approx=False)             # exact: keeps 1e-4-ish numerics
    lse = m + jnp.log(s)                                # (tb, 1) logsumexp

    # entropy(p) = -sum p*log p = lse - sum(p * logits)   (padded lanes contribute 0)
    mean_logit = jnp.sum(e * logits, axis=1, keepdims=True) * inv_s
    ent = (lse - mean_logit) * jnp.float32(inv_max_ent)  # (tb, 1), normalized

    # ---- per-sample cross-entropy NLL (in-kernel one-hot from int32 labels) ----
    onehot = (lane == lbl_ref[...]).astype(jnp.float32)   # lbl: (tb, 1) int32
    picked = jnp.sum(onehot * logits, axis=1, keepdims=True)
    nll = lse - picked                                     # (tb, 1)

    # ---- single lane-dense packed store ----
    packed = jnp.where(
        valid, logits,
        jnp.where(lane == L, ent,
                  jnp.where(lane == L + 1, nll, jnp.float32(0.0))))
    out_ref[...] = packed.astype(out_ref.dtype)


def decoder_forward(pooled_output, weight, bias, labels, num_labels, *,
                    block_rows=512, vmem_budget_bytes=40 * 1024 * 1024):
    """pooled_output: (B, H); weight: (L, H) (PyTorch layout); bias: (L,);
    labels: (B,) int.  Returns (logits, loss, batch_entropy)."""
    B, H = pooled_output.shape
    L = num_labels
    assert L > 1, "num_labels == 1 (MSE) branch not implemented"
    assert weight.shape == (L, H)

    act_dtype = pooled_output.dtype
    itemsize = jnp.dtype(act_dtype).itemsize

    # Packed output width: logits + entropy + nll lanes, rounded to 128 lanes.
    Wp = _round_up(L + 2, 128)

    # One-time wrapper-side weight transpose + zero pad (no per-step XLU work),
    # matched to the activation dtype for the MXU; bias stays f32 (post-matmul add).
    wT = jnp.zeros((H, Wp), dtype=act_dtype).at[:, :L].set(weight.T.astype(act_dtype))
    bias2 = jnp.zeros((1, Wp), dtype=jnp.float32).at[:, :L].set(bias.astype(jnp.float32))

    # ---- batch tile selection ----
    # (a) minimize last-tile padding, (b) >= 2 grid steps for medium batches so
    # both v7x TensorCores get work, (c) VMEM-budget cap on tb.
    num_tiles = pl.cdiv(B, block_rows)
    if B >= 16:
        num_tiles = max(num_tiles, 2)
    tb = _round_up(pl.cdiv(B, num_tiles), 8)

    const_bytes = 2 * (H * Wp * itemsize + Wp * 4)          # weight + bias (dbl-buffered)
    per_row_bytes = 2 * (H * itemsize + Wp * 4 + 4)         # x + packed out + label
    tb_cap = max(8, ((vmem_budget_bytes - const_bytes) // per_row_bytes) // 8 * 8)
    tb = max(8, min(tb, tb_cap))

    b_pad = _round_up(B, tb)
    if b_pad != B:
        pooled_output = jnp.pad(pooled_output, ((0, b_pad - B), (0, 0)))
        labels = jnp.pad(labels, ((0, b_pad - B),))
    labels2 = labels.astype(jnp.int32).reshape(b_pad, 1)

    grid = (b_pad // tb,)

    # VMEM limit derived from actual buffer sizes (not a fixed 32 MiB).
    vmem_needed = const_bytes + tb * per_row_bytes
    vmem_limit = int(min(max(vmem_needed + 8 * 1024 * 1024, 32 * 1024 * 1024),
                         64 * 1024 * 1024))

    inv_max_ent = 1.0 / (math.log(L) + 1e-5)     # compile-time constant
    kernel = functools.partial(_decoder_kernel, num_labels=L,
                               inv_max_ent=inv_max_ent)

    cost = pl.CostEstimate(
        flops=2 * b_pad * H * Wp,
        transcendentals=b_pad * (L + 1),
        bytes_accessed=(b_pad * H + H * Wp) * itemsize
        + (Wp + b_pad + b_pad * Wp) * 4,
    )

    packed = pl.pallas_call(
        kernel,
        grid=grid,
        out_shape=jax.ShapeDtypeStruct((b_pad, Wp), jnp.float32),
        in_specs=[
            pl.BlockSpec((tb, H), lambda i: (i, 0)),    # activations: tiled batch stream
            pl.BlockSpec((H, Wp), lambda i: (0, 0)),    # weight: grid-constant block
            pl.BlockSpec((1, Wp), lambda i: (0, 0)),    # bias: grid-constant block
            pl.BlockSpec((tb, 1), lambda i: (i, 0)),    # labels (int32)
        ],
        out_specs=pl.BlockSpec((tb, Wp), lambda i: (i, 0)),
        compiler_params=pltpu.CompilerParams(
            dimension_semantics=("parallel",),          # independent tiles -> megacore
            vmem_limit_bytes=vmem_limit,
        ),
        cost_estimate=cost,
    )(pooled_output, wT, bias2, labels2)

    logits = packed[:B, :L].astype(act_dtype)
    ent = packed[:B, L]
    nll = packed[:B, L + 1]
    loss = jnp.mean(nll)          # mean over the true batch (padded rows dropped)
    return logits, loss, ent


def _reference(pooled_output, weight, bias, labels, num_labels):
    logits = pooled_output @ weight.T + bias
    p = jax.nn.softmax(logits, axis=1)
    ent = -jnp.sum(p * jnp.log(p), axis=1) / (jnp.log(num_labels) + 1e-5)
    lse = jax.scipy.special.logsumexp(logits, axis=1)
    nll = lse - logits[jnp.arange(logits.shape[0]), labels]
    return logits, jnp.mean(nll), ent


if __name__ == "__main__":
    # Small shapes consistent with the module: Linear(hidden_size, num_labels)
    batch, hidden, num_labels = 8, 32, 4

    key = jax.random.PRNGKey(0)
    k_x, k_w, k_b, k_y = jax.random.split(key, 4)

    pooled_output = jax.random.normal(k_x, (batch, hidden), dtype=jnp.float32)
    weight = jax.random.normal(k_w, (num_labels, hidden), dtype=jnp.float32) * 0.1
    bias = jax.random.normal(k_b, (num_labels,), dtype=jnp.float32) * 0.1
    labels = jax.random.randint(k_y, (batch,), 0, num_labels, dtype=jnp.int32)

    logits, loss, batch_entropy = decoder_forward(
        pooled_output, weight, bias, labels, num_labels)
    jax.block_until_ready((logits, loss, batch_entropy))

    ref_logits, ref_loss, ref_ent = _reference(
        pooled_output, weight, bias, labels, num_labels)
    # Tolerance allows for MXU default-precision f32 matmul.
    assert np.allclose(np.asarray(logits), np.asarray(ref_logits),
                       atol=5e-3, rtol=5e-3)
    assert np.allclose(np.asarray(loss), np.asarray(ref_loss),
                       atol=5e-3, rtol=5e-3)
    assert np.allclose(np.asarray(batch_entropy), np.asarray(ref_ent),
                       atol=5e-3, rtol=5e-3)

    print("KERNEL_OK")
</pallas_src>

<mosaic_0001>
module attributes {stable_mosaic.version = 11 : i64} {
  func.func @_decoder_kernel(%arg0: i32, %arg1: memref<8x32xf32, #tpu.memory_space<vmem>>, %arg2: memref<32x128xf32, #tpu.memory_space<vmem>>, %arg3: memref<1x128xf32, #tpu.memory_space<vmem>>, %arg4: memref<8x1xi32, #tpu.memory_space<vmem>>, %arg5: memref<8x128xf32, #tpu.memory_space<vmem>>) attributes {dimension_semantics = [#tpu.dimension_semantics<parallel>], iteration_bounds = array<i64: 1>, scalar_prefetch = 0 : i64, scratch_operands = 0 : i64, tpu.core_type = #tpu.core_type<tc>, window_params = [{transform_indices = @transform_0, window_bounds = array<i64: 8, 32>}, {pipeline_mode = #tpu.pipeline_mode<synchronous>, transform_indices = @transform_1, window_bounds = array<i64: 32, 128>}, {pipeline_mode = #tpu.pipeline_mode<synchronous>, transform_indices = @transform_2, window_bounds = array<i64: 1, 128>}, {transform_indices = @transform_3, window_bounds = array<i64: 8, 1>}, {transform_indices = @transform_4, window_bounds = array<i64: 8, 128>}]} {
    %c0 = arith.constant 0 : index
    %c0_0 = arith.constant 0 : index
    %0 = vector.load %arg1[%c0, %c0_0] : memref<8x32xf32, #tpu.memory_space<vmem>>, vector<8x32xf32>
    %c0_1 = arith.constant 0 : index
    %c0_2 = arith.constant 0 : index
    %1 = vector.load %arg2[%c0_1, %c0_2] : memref<32x128xf32, #tpu.memory_space<vmem>>, vector<32x128xf32>
    %cst = arith.constant dense<0.000000e+00> : vector<8x128xf32>
    %2 = tpu.matmul %0, %1, %cst {dimension_numbers = #tpu.dot_dimension_numbers<[1], [0], [0], [1], [0, 0, 1, 1], [], []>} : vector<8x32xf32>, vector<32x128xf32>, vector<8x128xf32> -> vector<8x128xf32>
    %c0_3 = arith.constant 0 : index
    %c0_4 = arith.constant 0 : index
    %3 = vector.load %arg3[%c0_3, %c0_4] : memref<1x128xf32, #tpu.memory_space<vmem>>, vector<1x128xf32>
    %4 = vector.broadcast %3 : vector<1x128xf32> to vector<8x128xf32>
    %5 = arith.addf %2, %4 : vector<8x128xf32>
    %6 = tpu.iota {dimensions = array<i32: 1>} : vector<8x128xi32>
    %c4_i32 = arith.constant 4 : i32
    %7 = vector.broadcast %c4_i32 : i32 to vector<8x128xi32>
    %8 = arith.cmpi slt, %6, %7 : vector<8x128xi32>
    %cst_5 = arith.constant -1.000000e+30 : f32
    %9 = vector.broadcast %cst_5 : f32 to vector<8x128xf32>
    %10 = arith.select %8, %5, %9 : vector<8x128xi1>, vector<8x128xf32>
    %cst_6 = arith.constant dense<0xFF800000> : vector<8xf32>
    %11 = vector.multi_reduction <maximumf>, %10, %cst_6 [1] : vector<8x128xf32> to vector<8xf32>
    %12 = vector.shape_cast %11 : vector<8xf32> to vector<8x1xf32>
    %13 = vector.broadcast %12 : vector<8x1xf32> to vector<8x128xf32>
    %14 = arith.subf %10, %13 : vector<8x128xf32>
    %15 = math.exp %14 : vector<8x128xf32>
    %cst_7 = arith.constant dense<0.000000e+00> : vector<8xf32>
    %16 = vector.multi_reduction <add>, %15, %cst_7 [1] : vector<8x128xf32> to vector<8xf32>
    %17 = vector.shape_cast %16 : vector<8xf32> to vector<8x1xf32>
    %18 = tpu.reciprocal %17 : vector<8x1xf32> -> vector<8x1xf32>
    %19 = math.log %17 : vector<8x1xf32>
    %20 = arith.addf %12, %19 : vector<8x1xf32>
    %21 = arith.mulf %15, %5 : vector<8x128xf32>
    %cst_8 = arith.constant dense<0.000000e+00> : vector<8xf32>
    %22 = vector.multi_reduction <add>, %21, %cst_8 [1] : vector<8x128xf32> to vector<8xf32>
    %23 = vector.shape_cast %22 : vector<8xf32> to vector<8x1xf32>
    %24 = arith.mulf %23, %18 : vector<8x1xf32>
    %25 = arith.subf %20, %24 : vector<8x1xf32>
    %cst_9 = arith.constant 0.721342325 : f32
    %26 = vector.broadcast %cst_9 : f32 to vector<8x1xf32>
    %27 = arith.mulf %25, %26 : vector<8x1xf32>
    %c0_10 = arith.constant 0 : index
    %c0_11 = arith.constant 0 : index
    %28 = vector.load %arg4[%c0_10, %c0_11] : memref<8x1xi32, #tpu.memory_space<vmem>>, vector<8x1xi32>
    %29 = vector.broadcast %28 : vector<8x1xi32> to vector<8x128xi32>
    %30 = arith.cmpi eq, %6, %29 : vector<8x128xi32>
    %31 = arith.extui %30 : vector<8x128xi1> to vector<8x128xi32>
    %32 = arith.sitofp %31 : vector<8x128xi32> to vector<8x128xf32>
    %33 = arith.mulf %32, %5 : vector<8x128xf32>
    %cst_12 = arith.constant dense<0.000000e+00> : vector<8xf32>
    %34 = vector.multi_reduction <add>, %33, %cst_12 [1] : vector<8x128xf32> to vector<8xf32>
    %35 = vector.shape_cast %34 : vector<8xf32> to vector<8x1xf32>
    %36 = arith.subf %20, %35 : vector<8x1xf32>
    %c4_i32_13 = arith.constant 4 : i32
    %37 = vector.broadcast %c4_i32_13 : i32 to vector<8x128xi32>
    %38 = arith.cmpi eq, %6, %37 : vector<8x128xi32>
    %c5_i32 = arith.constant 5 : i32
    %39 = vector.broadcast %c5_i32 : i32 to vector<8x128xi32>
    %40 = arith.cmpi eq, %6, %39 : vector<8x128xi32>
    %cst_14 = arith.constant 0.000000e+00 : f32
    %41 = vector.shape_cast %36 : vector<8x1xf32> to vector<8x1xf32>
    %42 = vector.broadcast %41 : vector<8x1xf32> to vector<8x128xf32>
    %43 = vector.broadcast %cst_14 : f32 to vector<8x128xf32>
    %44 = arith.select %40, %42, %43 : vector<8x128xi1>, vector<8x128xf32>
    %45 = vector.shape_cast %27 : vector<8x1xf32> to vector<8x1xf32>
    %46 = vector.broadcast %45 : vector<8x1xf32> to vector<8x128xf32>
    %47 = arith.select %38, %46, %44 : vector<8x128xi1>, vector<8x128xf32>
    %48 = arith.select %8, %5, %47 : vector<8x128xi1>, vector<8x128xf32>
    %c0_15 = arith.constant 0 : index
    %c0_16 = arith.constant 0 : index
    %49 = vector.load %arg5[%c0_15, %c0_16] : memref<8x128xf32, #tpu.memory_space<vmem>>, vector<8x128xf32>
    tpu.vector_store %arg5[%c0_15, %c0_16], %48 {strides = array<i32>} : memref<8x128xf32, #tpu.memory_space<vmem>>, vector<8x128xf32>,
    return
  }
  func.func @transform_0(%arg0: i32) -> (i32, i32) {
    %c0_i32 = arith.constant 0 : i32
    %c0_i32_0 = arith.constant 0 : i32
    return %arg0, %c0_i32 : i32, i32
  }
  func.func @transform_1(%arg0: i32) -> (i32, i32) {
    %c0_i32 = arith.constant 0 : i32
    %c0_i32_0 = arith.constant 0 : i32
    %c0_i32_1 = arith.constant 0 : i32
    return %c0_i32, %c0_i32_0 : i32, i32
  }
  func.func @transform_2(%arg0: i32) -> (i32, i32) {
    %c0_i32 = arith.constant 0 : i32
    %c0_i32_0 = arith.constant 0 : i32
    %c0_i32_1 = arith.constant 0 : i32
    return %c0_i32, %c0_i32_0 : i32, i32
  }
  func.func @transform_3(%arg0: i32) -> (i32, i32) {
    %c0_i32 = arith.constant 0 : i32
    %c0_i32_0 = arith.constant 0 : i32
    return %arg0, %c0_i32 : i32, i32
  }
  func.func @transform_4(%arg0: i32) -> (i32, i32) {
    %c0_i32 = arith.constant 0 : i32
    %c0_i32_0 = arith.constant 0 : i32
    return %arg0, %c0_i32 : i32, i32
  }
}

</mosaic_0001>

<llo_original>
// kernel: tpu_custom_call.1
$region0: #{tpu_custom_call.1}
  #allocation0 [shape = 'u32[]', space=smem, size = 0x4, offset = 0x4, fixed_abs, tag = 'smem constant byte address 0x4 - core index']
  #allocation1 [shape = 'u32[72,128]{1,0:T(1,128)}', space=vmem, size = 0x9000, scoped, tag = 'internal scratch']
  %s0 = inlined_call_operand.vmem [shape: f32[8,32], index: 0, kind: input, shape index: {}]
  %s1 = inlined_call_operand.hbm [shape: f32[32,128], index: 1, kind: input, shape index: {}]
  %s2 = inlined_call_operand.vmem [shape: f32[1,128], index: 2, kind: input, shape index: {}]
  %s3 = inlined_call_operand.vmem [shape: s32[8,1], index: 3, kind: input, shape index: {}]
  %s4 = inlined_call_operand.hbm [shape: f32[8,128], index: 4, kind: output, shape index: {}]
  %s5 = sld [smem:[#allocation0]]
  $region30: #{tpu_custom_call.1} parent=0
    _
  %s7 = ssub.s32 1, %s5
  %s8 = scalar_select 0, %s7, %s5
  $region1: #{tpu_custom_call.1} parent=0
    #allocation2 [shape = 'u8[16384]{0}', space=vmem, size = 0x4000, scoped, tag = 'input window, operand 1, single buffered']
    #allocation3 [shape = 's32[1]{0}', space=sflag, size = 0x4, scoped, tag = 'scoped memory for tpu_custom_call.1']
    #allocation4 [shape = 's32[1]{0}', space=sflag, size = 0x4, scoped, tag = 'scoped memory for tpu_custom_call.1']
    #allocation5 [shape = 'u8[4096]{0}', space=vmem, size = 0x1000, scoped, tag = 'output window, operand 0, single buffered']
    %9 = vsyncpa [#allocation3], 0
    %10 = vsyncpa [#allocation4], 0
    // Predicated region
    $region2: #{tpu_custom_call.1} parent=1 // pred_check
      _
    $region3: #{tpu_custom_call.1} parent=1 // pred_check_branch
      %12 = sbr.rel (0) target = $region5
    $region4: #{tpu_custom_call.1} parent=1 // pred_region
      _
    $region5: #{tpu_custom_call.1} parent=1 // pred_fallthru
      _
    // Predicated region
    $region6: #{tpu_custom_call.1} parent=1 // pred_check
      _
    $region7: #{tpu_custom_call.1} parent=1 // pred_check_branch
      %14 = sbr.rel (0) target = $region9
    $region8: #{tpu_custom_call.1} parent=1 // pred_region
      %16 = vsyncadd [#allocation3], 0
      %s17 = sshll.u32 %s1, 4
      %s18 = int_to_ptr.hbm [resolvable:$true] %s17
      %s19 = sshll.u32 [#allocation2], 4
      %s20 = int_to_ptr.vmem [resolvable:$true] %s19
      %25 = dma.hbm_to_vmem [thread:$0]  %s18, 512, %s20, [#allocation3], 128, 128, 8
    $region9: #{tpu_custom_call.1} parent=1 // pred_fallthru
      _
    // Predicated region
    $region10: #{tpu_custom_call.1} parent=1 // pred_check
      _
    $region11: #{tpu_custom_call.1} parent=1 // pred_check_branch
      %27 = sbr.rel (0) target = $region13
    $region12: #{tpu_custom_call.1} parent=1 // pred_region
      _
    $region13: #{tpu_custom_call.1} parent=1 // pred_fallthru
      _
    // Predicated region
    $region14: #{tpu_custom_call.1} parent=1 // pred_check
      _
    $region15: #{tpu_custom_call.1} parent=1 // pred_check_branch
      %29 = sbr.rel (0) target = $region17
    $region16: #{tpu_custom_call.1} parent=1 // pred_region
      _
    $region17: #{tpu_custom_call.1} parent=1 // pred_fallthru
      _
    // Predicated region
    $region18: #{tpu_custom_call.1} parent=1 // pred_check
      _
    $region19: #{tpu_custom_call.1} parent=1 // pred_check_branch
      %31 = sbr.rel (0) target = $region21
    $region20: #{tpu_custom_call.1} parent=1 // pred_region
      %33 = dma.done [#allocation3], 512
    $region21: #{tpu_custom_call.1} parent=1 // pred_fallthru
      _
    %v34 = vld [vmem:[%s0] sm:$0xff]
    %v35 = vld [vmem:[#allocation2] sm:$0xff]
    %v36 = vld [vmem:[#allocation2 + $0x8] sm:$0xff]
    %v37 = vld [vmem:[#allocation2 + $0x10] sm:$0xff]
    %v38 = vld [vmem:[#allocation2 + $0x18] sm:$0xff]
    %v39 = vld [vmem:[%s2] sm:$0x1]
    %v41 = vperm.slane %v39, 0
    %vm43 = vcmask 261120
    %v45 = vsel %vm43, %v34, 0
    %47 = vmatpush.msra.mxu0 0.0
    %48 = vmatpush.msra.mxu0 0.0
    %49 = vmatpush.msra.mxu0 0.0
    %50 = vmatpush.msra.mxu0 0.0
    %51 = vmatpush.msra.mxu0 0.0
    %52 = vmatpush.msra.mxu0 0.0
    %53 = vmatpush.msra.mxu0 0.0
    %54 = vmatpush.msra.mxu0 0.0
    %55 = vmatpush.msra.mxu0 0.0
    %56 = vmatpush.msra.mxu0 0.0
    %57 = vmatpush.msra.mxu0 0.0
    %58 = vmatpush.msra.mxu0 0.0
    %59 = vmatpush.msra.mxu0 %v38
    %60 = vmatpush.msra.mxu0 %v37
    %61 = vmatpush.msra.mxu0 %v36
    %62 = vmatpush.msra.mxu0 %v35
    %63 = vmatmul.f32.gmra.mxu0 %v45
    %v64 = vpop.f32.mrf.mxu0
    %v65 = vadd.f32 %v41, %v64
    %66 = vdwg.mxu0
    %v67 = vlaneseq
    %v68 = vand.u32 %v67, 127
    %vm69 = vcmp.lt.s32.totalorder %v68, 4
    %v70 = vsel %vm69, %v65, -1e+30
    %71 = vmax.xlane.f32.xlu0 %v70
    %v72 = vpop.xlane.xlu0 %71
    %v73 = vsub.f32 %v70, %v72
    %v74 = vmul.f32 %v73, 1.442695
    %v75 = vpow.pop %v74
    %76 = vadd.xlane.f32.xlu0 %v75
    %v77 = vpop.xlane.xlu0 %76
    %v78 = vrcp.pop %v77
    %v79 = vmul.f32 %v77, %v78
    %v80 = vsub.f32 1.0, %v79
    %v81 = vmul.f32 %v78, %v80
    %v82 = vadd.f32 %v78, %v81
    %vm83 = vweird.f32 %v77
    %vm84 = vweird.f32 %v78
    %vm85 = vmor %vm83, %vm84
    %v86 = vsel %vm85, %v78, %v82
    %v87 = vand.u32 2147483647, %v77
    %vm88 = vcmp.eq.f32.partialorder %v87, 8.507059e+37
    %v89 = vand.u32 %v77, 2147483648
    %v90 = vor.u32 1.1754944e-38, %v89
    %v91 = vsel %vm88, %v90, %v86
    %v92 = vlog2.pop %v77
    %v93 = vmul.f32 %v92, 0.6931472
    %v94 = vadd.f32 %v72, %v93
    %v95 = vmul.f32 %v75, %v65
    %96 = vadd.xlane.f32.xlu0 %v95
    %v97 = vpop.xlane.xlu0 %96
    %v98 = vmul.f32 %v97, %v91
    %v99 = vsub.f32 %v94, %v98
    %v100 = vmul.f32 %v99, 0.7213423
    %v101 = vld [vmem:[%s3] sm:$0xff]
    %102 = vset.pattern.permute.xlu0 0
    %103 = vperm.xlu0 %102, %v101
    %v104 = vpop.permute.xlu0 %103
    %vm105 = vcmp.eq.s32.totalorder %v68, %v104
    %v106 = vsel %vm105, 1, 0
    %v107 = vcvt.s32.f32 %v106
    %v108 = vmul.f32 %v107, %v65
    %109 = vadd.xlane.f32.xlu0 %v108
    %v110 = vpop.xlane.xlu0 %109
    %v111 = vsub.f32 %v94, %v110
    %vm112 = vcmp.eq.s32.totalorder %v68, 4
    %vm113 = vcmp.eq.s32.totalorder %v68, 5
    %v114 = vsel %vm113, %v111, 0.0
    %v115 = vsel %vm112, %v100, %v114
    %v116 = vsel %vm69, %v65, %v115
    %117 = vst [vmem:[#allocation5] sm:$0xff] %v116
    // Predicated region
    $region22: #{tpu_custom_call.1} parent=1 // pred_check
      _
    $region23: #{tpu_custom_call.1} parent=1 // pred_check_branch
      %119 = sbr.rel (0) target = $region25
    $region24: #{tpu_custom_call.1} parent=1 // pred_region
      %121 = vsyncadd [#allocation4], 0
      %s123 = sshll.u32 [#allocation5], 4
      %s124 = int_to_ptr.vmem [resolvable:$true] %s123
      %s125 = sshll.u32 %s4, 4
      %s126 = int_to_ptr.hbm [resolvable:$true] %s125
      %128 = dma.vmem_to_hbm [thread:$0]  %s124, 128, %s126, [#allocation4]
    $region25: #{tpu_custom_call.1} parent=1 // pred_fallthru
      _
    // Predicated region
    $region26: #{tpu_custom_call.1} parent=1 // pred_check
      _
    $region27: #{tpu_custom_call.1} parent=1 // pred_check_branch
      %130 = sbr.rel (0) target = $region29
    $region28: #{tpu_custom_call.1} parent=1 // pred_region
      %132 = dma.done [#allocation4], 128
    $region29: #{tpu_custom_call.1} parent=1 // pred_fallthru
      _
    %133 = vsyncpa [#allocation3], 1
    %134 = vsyncpa [#allocation4], 1

</llo_original>
